<compile_context>
chip_gen: v6e
topology: v6e:2x2x1
jax: 0.10.0
libtpu: 0.0.40
codegen_flags: <defaults>
</compile_context>

<pallas_src>
import functools

import jax
import jax.numpy as jnp
from jax.experimental import pallas as pl
from jax.experimental.pallas import tpu as pltpu


def _clip_cosine_loss_kernel(a_ref, b_ref, out_ref, *, tile_b, batch, ragged):
    """Per-tile partial sum of (1 - cosine_similarity(a_row, b_row)).

    a_ref / b_ref : (tile_b, D) feature tiles (full feature dim, lane-dense).
    out_ref       : (1, 1) SMEM block; receives this tile's partial sum.
    No carried state across grid steps -> the batch axis is fully parallel.
    """
    i = pl.program_id(0)

    a = a_ref[...].astype(jnp.float32)
    b = b_ref[...].astype(jnp.float32)

    # Row-wise dot products / squared norms (one lane reduction each).
    ab = jnp.sum(a * b, axis=-1, keepdims=True)   # (tile_b, 1)
    aa = jnp.sum(a * a, axis=-1, keepdims=True)
    bb = jnp.sum(b * b, axis=-1, keepdims=True)

    # torch.cosine_similarity semantics: denom = max(||a||, eps) * max(||b||, eps).
    eps = jnp.float32(1e-8)
    denom = jnp.maximum(jnp.sqrt(aa), eps) * jnp.maximum(jnp.sqrt(bb), eps)
    contrib = 1.0 - ab / denom                    # (tile_b, 1)

    if ragged:
        # Static flag: only emitted when batch % tile_b != 0.  Masks rows of the
        # (garbage-padded) final tile; jnp.where is a true select, so NaN/Inf
        # from out-of-bounds rows cannot propagate.
        row = i * tile_b + jax.lax.broadcasted_iota(jnp.int32, (tile_b, 1), 0)
        contrib = jnp.where(row < batch, contrib, 0.0)

    out_ref[0, 0] = jnp.sum(contrib)


def _default_tile_b():
    # v5e's 16 MiB default scoped VMEM caps the double-buffered f32 inputs at
    # tile_b=1024 (2 inputs x 2 buffers x 1024 x 512 x 4B = 8 MiB + headroom);
    # v6e / v7x (32 MiB default scoped) comfortably take 2048 without raising
    # vmem_limit_bytes.
    try:
        kind = jax.devices()[0].device_kind.lower()
    except Exception:
        return 1024
    if "v5" in kind:
        return 1024
    return 2048


def clip_image_similarity_loss(input_features, output_features, *, tile_b=None):
    """mean(1 - cosine_similarity) over the batch -- matches CLIPLoss.forward
    applied to the CLIP image embeddings of the original / reconstructed images.

    Accepts f32, bf16 or f16 feature tensors; math is done in f32 in-kernel.
    """
    assert input_features.shape == output_features.shape
    assert input_features.dtype == output_features.dtype
    assert input_features.ndim == 2
    batch, feat_dim = input_features.shape
    itemsize = jnp.dtype(input_features.dtype).itemsize

    if tile_b is None:
        tile_b = _default_tile_b()

    # Single full-array block when the batch is small; otherwise big row tiles.
    tb = batch if batch <= tile_b else tile_b
    if batch > tb:
        # Sublane dim of a non-full-extent block must respect the packing:
        # multiples of 8 (f32), 16 (bf16/f16), 32 (int8/fp8).
        min_sub = {4: 8, 2: 16, 1: 32}[itemsize]
        assert tb % min_sub == 0, (tb, min_sub)

    num_tiles = pl.cdiv(batch, tb)
    ragged = (batch % tb) != 0

    kernel = functools.partial(
        _clip_cosine_loss_kernel, tile_b=tb, batch=batch, ragged=ragged
    )

    cost = pl.CostEstimate(
        flops=6 * batch * feat_dim,                       # 3 muls + 3 adds / elem
        transcendentals=2 * batch,                        # two sqrts per row
        bytes_accessed=2 * batch * feat_dim * itemsize + 4 * num_tiles,
    )

    partials = pl.pallas_call(
        kernel,
        out_shape=jax.ShapeDtypeStruct((num_tiles, 1), jnp.float32),
        grid_spec=pltpu.PrefetchScalarGridSpec(
            num_scalar_prefetch=0,
            grid=(num_tiles,),
            in_specs=[
                pl.BlockSpec((tb, feat_dim), lambda i: (i, 0)),
                pl.BlockSpec((tb, feat_dim), lambda i: (i, 0)),
            ],
            out_specs=pl.BlockSpec(
                (1, 1), lambda i: (i, 0), memory_space=pltpu.SMEM
            ),
        ),
        compiler_params=pltpu.CompilerParams(
            # No carried accumulator -> the batch axis is embarrassingly
            # parallel; lets v7x shard the stream across both TensorCores.
            dimension_semantics=("parallel",),
        ),
        cost_estimate=cost,
    )(input_features, output_features)

    # Tiny final reduction over per-tile partials in plain JAX.
    return jnp.sum(partials) / jnp.float32(batch)


if __name__ == "__main__":
    key = jax.random.PRNGKey(0)
    k1, k2 = jax.random.split(key)

    # TODO(synk): F.interpolate(..., size=(224, 224), mode='bilinear') and the
    # frozen pretrained CLIP ViT-B/32 image encoder (clip_model.encode_image)
    # are an external model with downloaded weights and have no in-script
    # Pallas equivalent; the kernel implements the loss head over its (B, 512)
    # image embeddings.
    batch, feat_dim = 2, 512  # ViT-B/32 embedding dim, batch of 2 images
    a32 = jax.random.normal(k1, (batch, feat_dim), dtype=jnp.float32)
    b32 = jax.random.normal(k2, (batch, feat_dim), dtype=jnp.float32)

    def ref_loss(a, b):
        a = a.astype(jnp.float32)
        b = b.astype(jnp.float32)
        an = a / jnp.linalg.norm(a, axis=-1, keepdims=True)
        bn = b / jnp.linalg.norm(b, axis=-1, keepdims=True)
        return jnp.mean(1.0 - jnp.sum(an * bn, axis=-1))

    # f32 path (single full-array block, grid of 1).
    loss32 = clip_image_similarity_loss(a32, b32)
    jax.block_until_ready(loss32)
    assert jnp.allclose(loss32, ref_loss(a32, b32), rtol=1e-5, atol=1e-5), (
        loss32, ref_loss(a32, b32))

    # bf16 at the pallas_call boundary (halves HBM traffic); in-kernel math f32.
    a16, b16 = a32.astype(jnp.bfloat16), b32.astype(jnp.bfloat16)
    loss16 = clip_image_similarity_loss(a16, b16)
    jax.block_until_ready(loss16)
    assert jnp.allclose(loss16, ref_loss(a16, b16), rtol=1e-4, atol=1e-4), (
        loss16, ref_loss(a16, b16))

    # Multi-tile + ragged-tail path (tiny tile override purely for coverage).
    batch_r = 20
    a_r = jax.random.normal(jax.random.PRNGKey(1), (batch_r, feat_dim), jnp.float32)
    b_r = jax.random.normal(jax.random.PRNGKey(2), (batch_r, feat_dim), jnp.float32)
    loss_r = clip_image_similarity_loss(a_r, b_r, tile_b=8)
    jax.block_until_ready(loss_r)
    assert jnp.allclose(loss_r, ref_loss(a_r, b_r), rtol=1e-5, atol=1e-5), (
        loss_r, ref_loss(a_r, b_r))

    print("KERNEL_OK")
</pallas_src>

<mosaic_0001>
module attributes {stable_mosaic.version = 11 : i64} {
  func.func @_clip_cosine_loss_kernel(%arg0: i32, %arg1: memref<2x512xf32, #tpu.memory_space<vmem>>, %arg2: memref<2x512xf32, #tpu.memory_space<vmem>>, %arg3: memref<1x1xf32, #tpu.memory_space<smem>>) attributes {dimension_semantics = [#tpu.dimension_semantics<parallel>], iteration_bounds = array<i64: 1>, scalar_prefetch = 0 : i64, scratch_operands = 0 : i64, tpu.core_type = #tpu.core_type<tc>, window_params = [{transform_indices = @transform_0, window_bounds = array<i64: 2, 512>}, {transform_indices = @transform_1, window_bounds = array<i64: 2, 512>}, {transform_indices = @transform_2, window_bounds = array<i64: 1, 1>}]} {
    %c0 = arith.constant 0 : index
    %c0_0 = arith.constant 0 : index
    %0 = vector.load %arg1[%c0, %c0_0] : memref<2x512xf32, #tpu.memory_space<vmem>>, vector<2x512xf32>
    %c0_1 = arith.constant 0 : index
    %c0_2 = arith.constant 0 : index
    %1 = vector.load %arg2[%c0_1, %c0_2] : memref<2x512xf32, #tpu.memory_space<vmem>>, vector<2x512xf32>
    %2 = arith.mulf %0, %1 : vector<2x512xf32>
    %cst = arith.constant dense<0.000000e+00> : vector<2xf32>
    %3 = vector.multi_reduction <add>, %2, %cst [1] : vector<2x512xf32> to vector<2xf32>
    %4 = vector.shape_cast %3 : vector<2xf32> to vector<2x1xf32>
    %5 = arith.mulf %0, %0 : vector<2x512xf32>
    %cst_3 = arith.constant dense<0.000000e+00> : vector<2xf32>
    %6 = vector.multi_reduction <add>, %5, %cst_3 [1] : vector<2x512xf32> to vector<2xf32>
    %7 = vector.shape_cast %6 : vector<2xf32> to vector<2x1xf32>
    %8 = arith.mulf %1, %1 : vector<2x512xf32>
    %cst_4 = arith.constant dense<0.000000e+00> : vector<2xf32>
    %9 = vector.multi_reduction <add>, %8, %cst_4 [1] : vector<2x512xf32> to vector<2xf32>
    %10 = vector.shape_cast %9 : vector<2xf32> to vector<2x1xf32>
    %11 = math.sqrt %7 : vector<2x1xf32>
    %cst_5 = arith.constant 9.99999993E-9 : f32
    %12 = vector.broadcast %cst_5 : f32 to vector<2x1xf32>
    %13 = arith.maximumf %11, %12 : vector<2x1xf32>
    %14 = math.sqrt %10 : vector<2x1xf32>
    %cst_6 = arith.constant 9.99999993E-9 : f32
    %15 = vector.broadcast %cst_6 : f32 to vector<2x1xf32>
    %16 = arith.maximumf %14, %15 : vector<2x1xf32>
    %17 = arith.mulf %13, %16 : vector<2x1xf32>
    %18 = arith.divf %4, %17 : vector<2x1xf32>
    %cst_7 = arith.constant 1.000000e+00 : f32
    %19 = vector.broadcast %cst_7 : f32 to vector<2x1xf32>
    %20 = arith.subf %19, %18 : vector<2x1xf32>
    %21 = vector.shape_cast %20 : vector<2x1xf32> to vector<1x2x1xf32>
    %cst_8 = arith.constant dense<0.000000e+00> : vector<1xf32>
    %22 = vector.multi_reduction <add>, %21, %cst_8 [1, 2] : vector<1x2x1xf32> to vector<1xf32>
    %23 = vector.shape_cast %22 : vector<1xf32> to vector<1x1x1xf32>
    %24 = vector.extract %23[0, 0, 0] : f32 from vector<1x1x1xf32>
    %c0_9 = arith.constant 0 : index
    %c0_10 = arith.constant 0 : index
    %25 = memref.load %arg3[%c0_9, %c0_10] : memref<1x1xf32, #tpu.memory_space<smem>>
    memref.store %24, %arg3[%c0_9, %c0_10] : memref<1x1xf32, #tpu.memory_space<smem>>
    return
  }
  func.func @transform_0(%arg0: i32) -> (i32, i32) {
    %c0_i32 = arith.constant 0 : i32
    %c0_i32_0 = arith.constant 0 : i32
    return %arg0, %c0_i32 : i32, i32
  }
  func.func @transform_1(%arg0: i32) -> (i32, i32) {
    %c0_i32 = arith.constant 0 : i32
    %c0_i32_0 = arith.constant 0 : i32
    return %arg0, %c0_i32 : i32, i32
  }
  func.func @transform_2(%arg0: i32) -> (i32, i32) {
    %c0_i32 = arith.constant 0 : i32
    %c0_i32_0 = arith.constant 0 : i32
    return %arg0, %c0_i32 : i32, i32
  }
}

</mosaic_0001>

<llo_original>
// kernel: tpu_custom_call.1
$region0: #{tpu_custom_call.1}
  #allocation0 [shape = 'u32[]', space=smem, size = 0x4, offset = 0x4, fixed_abs, tag = 'smem constant byte address 0x4 - core index']
  #allocation1 [shape = 'u32[144,128]{1,0:T(1,128)}', space=vmem, size = 0x12000, scoped, tag = 'internal scratch']
  %s0 = inlined_call_operand.hbm [shape: f32[2,512], index: 0, kind: input, shape index: {}]
  %s1 = inlined_call_operand.hbm [shape: f32[2,512], index: 1, kind: input, shape index: {}]
  %s2 = inlined_call_operand.hbm [shape: f32[1,1], index: 2, kind: output, shape index: {}]
  %s3 = sld [smem:[#allocation0]]
  $region26: #{tpu_custom_call.1} parent=0
    _
  %s5 = ssub.s32 1, %s3
  %s6 = scalar_select 0, %s5, %s3
  $region1: #{tpu_custom_call.1} parent=0
    #allocation2 [shape = 'u8[4096]{0}', space=vmem, size = 0x1000, scoped, tag = 'input window, operand 0, single buffered']
    #allocation3 [shape = 's32[1]{0}', space=sflag, size = 0x4, scoped, tag = 'scoped memory for tpu_custom_call.1']
    #allocation4 [shape = 's32[1]{0}', space=sflag, size = 0x4, scoped, tag = 'scoped memory for tpu_custom_call.1']
    #allocation5 [shape = 'u8[4096]{0}', space=vmem, size = 0x1000, scoped, tag = 'input window, operand 1, single buffered']
    #allocation6 [shape = 's32[1]{0}', space=sflag, size = 0x4, scoped, tag = 'scoped memory for tpu_custom_call.1']
    #allocation7 [shape = 'u8[512]{0}', space=smem, size = 0x200, scoped, tag = 'output window, operand 0, single buffered']
    %7 = vsyncpa [#allocation3], 0
    %8 = vsyncpa [#allocation6], 0
    %9 = vsyncpa [#allocation4], 0
    // Predicated region
    $region2: #{tpu_custom_call.1} parent=1 // pred_check
      _
    $region3: #{tpu_custom_call.1} parent=1 // pred_check_branch
      %11 = sbr.rel (0) target = $region5
    $region4: #{tpu_custom_call.1} parent=1 // pred_region
      %s13 = ssub.s32 128, 128
      %14 = vsyncadd [#allocation3], %s13
      %s16 = sshll.u32 [#allocation2], 4
      %s17 = int_to_ptr.vmem [resolvable:$true] %s16
      %19 = dma.hbm_to_vmem [thread:$0]  %s0, 128, %s17, [#allocation3]
    $region5: #{tpu_custom_call.1} parent=1 // pred_fallthru
      _
    // Predicated region
    $region6: #{tpu_custom_call.1} parent=1 // pred_check
      _
    $region7: #{tpu_custom_call.1} parent=1 // pred_check_branch
      %21 = sbr.rel (0) target = $region9
    $region8: #{tpu_custom_call.1} parent=1 // pred_region
      %s23 = ssub.s32 128, 128
      %24 = vsyncadd [#allocation6], %s23
      %s26 = sshll.u32 [#allocation5], 4
      %s27 = int_to_ptr.vmem [resolvable:$true] %s26
      %29 = dma.hbm_to_vmem [thread:$0]  %s1, 128, %s27, [#allocation6]
    $region9: #{tpu_custom_call.1} parent=1 // pred_fallthru
      _
    // Predicated region
    $region10: #{tpu_custom_call.1} parent=1 // pred_check
      _
    $region11: #{tpu_custom_call.1} parent=1 // pred_check_branch
      %31 = sbr.rel (0) target = $region13
    $region12: #{tpu_custom_call.1} parent=1 // pred_region
      %32 = dma.done [#allocation3], 128
    $region13: #{tpu_custom_call.1} parent=1 // pred_fallthru
      _
    // Predicated region
    $region14: #{tpu_custom_call.1} parent=1 // pred_check
      _
    $region15: #{tpu_custom_call.1} parent=1 // pred_check_branch
      %34 = sbr.rel (0) target = $region17
    $region16: #{tpu_custom_call.1} parent=1 // pred_region
      %35 = dma.done [#allocation6], 128
    $region17: #{tpu_custom_call.1} parent=1 // pred_fallthru
      _
    %v36 = vld [vmem:[#allocation2] sm:$0xff]
    %v37 = vld [vmem:[#allocation5] sm:$0xff]
    %v38 = vmul.f32 %v36, %v37
    %v40 = vcombine.high %v38, %v38
    %v42 = vunpack.c.l.s4 1983009808
    %v43 = vunpack.c.0.s8 %v42
    %v44 = vlaneseq
    %v45 = vshrl.u32 %v44, 7
    %v46 = vsub.s32 %v43, %v45
    %v47 = vrot.slane %v38, %v46
    %v49 = vunpack.c.l.s4 1983009808
    %v50 = vunpack.c.0.s8 %v49
    %v51 = vlaneseq
    %v52 = vshrl.u32 %v51, 7
    %v53 = vsub.s32 %v50, %v52
    %v54 = vrot.slane %v40, %v53
    %v55 = vcombine.high %v47, %v47
    %v56 = vcombine.high %v54, %v54
    %vm61 = vcmask 1041408
    %v62 = vsel %vm61, %v47, 0.0
    %v63 = vsel %vm61, %v55, 0.0
    %v64 = vadd.f32 %v62, %v63
    %v65 = vsel %vm61, %v54, 0.0
    %v66 = vadd.f32 %v64, %v65
    %v67 = vsel %vm61, %v56, 0.0
    %v68 = vadd.f32 %v66, %v67
    %69 = vadd.xlane.f32.xlu0 %v68
    %v70 = vpop.xlane.xlu0 %69
    %v71 = vmul.f32 %v36, %v36
    %v73 = vcombine.high %v71, %v71
    %v75 = vunpack.c.l.s4 1983009808
    %v76 = vunpack.c.0.s8 %v75
    %v77 = vlaneseq
    %v78 = vshrl.u32 %v77, 7
    %v79 = vsub.s32 %v76, %v78
    %v80 = vrot.slane %v71, %v79
    %v82 = vunpack.c.l.s4 1983009808
    %v83 = vunpack.c.0.s8 %v82
    %v84 = vlaneseq
    %v85 = vshrl.u32 %v84, 7
    %v86 = vsub.s32 %v83, %v85
    %v87 = vrot.slane %v73, %v86
    %v88 = vcombine.high %v80, %v80
    %v89 = vcombine.high %v87, %v87
    %v94 = vsel %vm61, %v80, 0.0
    %v95 = vsel %vm61, %v88, 0.0
    %v96 = vadd.f32 %v94, %v95
    %v97 = vsel %vm61, %v87, 0.0
    %v98 = vadd.f32 %v96, %v97
    %v99 = vsel %vm61, %v89, 0.0
    %v100 = vadd.f32 %v98, %v99
    %101 = vadd.xlane.f32.xlu0 %v100
    %v102 = vpop.xlane.xlu0 %101
    %v103 = vmul.f32 %v37, %v37
    %v105 = vcombine.high %v103, %v103
    %v107 = vunpack.c.l.s4 1983009808
    %v108 = vunpack.c.0.s8 %v107
    %v109 = vlaneseq
    %v110 = vshrl.u32 %v109, 7
    %v111 = vsub.s32 %v108, %v110
    %v112 = vrot.slane %v103, %v111
    %v114 = vunpack.c.l.s4 1983009808
    %v115 = vunpack.c.0.s8 %v114
    %v116 = vlaneseq
    %v117 = vshrl.u32 %v116, 7
    %v118 = vsub.s32 %v115, %v117
    %v119 = vrot.slane %v105, %v118
    %v120 = vcombine.high %v112, %v112
    %v121 = vcombine.high %v119, %v119
    %v126 = vsel %vm61, %v112, 0.0
    %v127 = vsel %vm61, %v120, 0.0
    %v128 = vadd.f32 %v126, %v127
    %v129 = vsel %vm61, %v119, 0.0
    %v130 = vadd.f32 %v128, %v129
    %v131 = vsel %vm61, %v121, 0.0
    %v132 = vadd.f32 %v130, %v131
    %133 = vadd.xlane.f32.xlu0 %v132
    %v134 = vpop.xlane.xlu0 %133
    %v135 = vrsqrt.pop %v102
    %v136 = vmul.f32 %v102, %v135
    %vm137 = vcmp.eq.f32.partialorder %v102, inf
    %v138 = vsel %vm137, %v102, %v136
    %vm139 = vcmp.eq.f32.partialorder %v102, 0.0
    %v140 = vand.u32 %v102, 2147483648
    %v141 = vsel %vm139, %v140, %v138
    %v142 = vmax.f32 %v141, 1e-08
    %v143 = vrsqrt.pop %v134
    %v144 = vmul.f32 %v134, %v143
    %vm145 = vcmp.eq.f32.partialorder %v134, inf
    %v146 = vsel %vm145, %v134, %v144
    %vm147 = vcmp.eq.f32.partialorder %v134, 0.0
    %v148 = vand.u32 %v134, 2147483648
    %v149 = vsel %vm147, %v148, %v146
    %v150 = vmax.f32 %v149, 1e-08
    %v151 = vmul.f32 %v142, %v150
    %v152 = vrcp.pop %v151
    %v153 = vmul.f32 %v70, %v152
    %v154 = vsub.f32 1.0, %v153
    %vm155 = vcmask 1024
    %v156 = vsel %vm155, %v154, 0.0
    %157 = vadd.xlane.f32.xlu0 %v156
    %v158 = vpop.xlane.xlu0 %157
    %v159 = vrot.slane %v158, 4
    %v160 = vadd.f32 %v158, %v159
    %v161 = vrot.slane %v160, 2
    %v162 = vadd.f32 %v160, %v161
    %v163 = vrot.slane %v162, 1
    %v164 = vadd.f32 %v162, %v163
    %s165 = vtos %v164
    %s166 = scalar_lea.smem [#allocation7], 0
    %167 = sst [smem:[%s166]] %s165
    // Predicated region
    $region18: #{tpu_custom_call.1} parent=1 // pred_check
      _
    $region19: #{tpu_custom_call.1} parent=1 // pred_check_branch
      %169 = sbr.rel (0) target = $region21
    $region20: #{tpu_custom_call.1} parent=1 // pred_region
      %s171 = ssub.s32 16, 16
      %172 = vsyncadd [#allocation4], %s171
      %175 = dma.smem_to_hbm [#allocation7], 16, %s2, [#allocation4]
    $region21: #{tpu_custom_call.1} parent=1 // pred_fallthru
      _
    // Predicated region
    $region22: #{tpu_custom_call.1} parent=1 // pred_check
      _
    $region23: #{tpu_custom_call.1} parent=1 // pred_check_branch
      %177 = sbr.rel (0) target = $region25
    $region24: #{tpu_custom_call.1} parent=1 // pred_region
      %178 = dma.done [#allocation4], 16
    $region25: #{tpu_custom_call.1} parent=1 // pred_fallthru
      _
    %179 = sfence
    %180 = vsyncpa [#allocation3], 1
    %181 = vsyncpa [#allocation6], 1
    %182 = vsyncpa [#allocation4], 1

</llo_original>
